<compile_context>
chip_gen: v7x
topology: tpu7x:2x2x1
jax: 0.10.0
libtpu: 0.0.40
codegen_flags: <defaults>
</compile_context>

<pallas_src>
import functools

import jax
import jax.numpy as jnp
from jax.experimental import pallas as pl
from jax.experimental.pallas import tpu as pltpu

LANE = 128            # vreg lane width
TM_MAX = 4096         # max batch-tile (lane-axis) width; sweep 2048-8192 if tuning


def _round_up(n, m):
    return ((n + m - 1) // m) * m


def _mlp_kernel(xt_ref, w1_ref, w2_ref, w3_ref, w4_ref, b_ref, o_ref,
                *, h1, h2, h3, nout):
    # Batch-in-lanes layout:
    #   xt_ref : (F,   TM)  input tile, batch on the lane axis (streamed per step)
    #   wN_ref : (out, in)  transposed weights, VMEM-resident across all steps
    #   b_ref  : (64,  1)   packed biases [b1 | b2 | b3 | b4 | zero-pad] column
    #   o_ref  : (out, TM)  lane-dense sigmoid output tile (out == 1 here)
    xt = xt_ref[...]
    b1 = b_ref[pl.ds(0, h1), :]
    b2 = b_ref[pl.ds(h1, h2), :]
    b3 = b_ref[pl.ds(h1 + h2, h3), :]
    b4 = b_ref[pl.ds(h1 + h2 + h3, nout), :]

    a = jnp.tanh(jnp.dot(w1_ref[...], xt, preferred_element_type=jnp.float32) + b1)
    a = jnp.tanh(jnp.dot(w2_ref[...], a, preferred_element_type=jnp.float32) + b2)
    a = jnp.tanh(jnp.dot(w3_ref[...], a, preferred_element_type=jnp.float32) + b3)
    z = jnp.dot(w4_ref[...], a, preferred_element_type=jnp.float32) + b4
    o_ref[...] = jax.nn.sigmoid(z)


def neural_net_forward(x, params):
    """x: (B, input_features) f32. params: wN of shape (in, out), bN of shape (1, out)."""
    B, F = x.shape
    h1 = params["w1"].shape[1]
    h2 = params["w2"].shape[1]
    h3 = params["w3"].shape[1]
    nout = params["w4"].shape[1]

    # --- transposed weights: layer computes a_next = W^T @ a + b^T -----------
    w1t = params["w1"].T.astype(jnp.float32)          # (h1,  F)
    w2t = params["w2"].T.astype(jnp.float32)          # (h2,  h1)
    w3t = params["w3"].T.astype(jnp.float32)          # (h3,  h2)
    w4t = params["w4"].T.astype(jnp.float32)          # (out, h3)

    # --- all biases in one sublane-aligned column operand --------------------
    nb = h1 + h2 + h3 + nout                           # 57
    brows = _round_up(nb, 8)                           # 64
    b_all = jnp.concatenate(
        [params["b1"][0], params["b2"][0], params["b3"][0], params["b4"][0]]
    ).astype(jnp.float32)
    b_all = jnp.pad(b_all, (0, brows - nb)).reshape(brows, 1)

    # --- batch tiling: large lane-axis tiles, even step count for v7x --------
    bp0 = _round_up(B, LANE)                           # at least one full lane tile
    steps = max(1, pl.cdiv(bp0, TM_MAX))
    if bp0 > LANE:                                     # >1 lane tile -> split evenly across 2 TCs
        steps = _round_up(max(steps, 2), 2)
    tm = _round_up(pl.cdiv(bp0, steps), LANE)
    bp = steps * tm

    # only wrapper copy: tiny (B, F) -> (F, bp) transpose + zero-pad (32 B/row)
    xt = jnp.pad(x.astype(jnp.float32).T, ((0, 0), (0, bp - B)))

    kernel = functools.partial(_mlp_kernel, h1=h1, h2=h2, h3=h3, nout=nout)
    const = lambda shape: pl.BlockSpec(shape, lambda i: (0, 0))

    out_t = pl.pallas_call(
        kernel,
        out_shape=jax.ShapeDtypeStruct((nout, bp), jnp.float32),
        grid=(steps,),
        in_specs=[
            pl.BlockSpec((F, tm), lambda i: (0, i)),   # input tile moves with the grid
            const((h1, F)),                            # weights/biases pinned in VMEM
            const((h2, h1)),
            const((h3, h2)),
            const((nout, h3)),
            const((brows, 1)),
        ],
        out_specs=pl.BlockSpec((nout, tm), lambda i: (0, i)),   # lane-dense store
        compiler_params=pltpu.CompilerParams(
            dimension_semantics=("parallel",),
        ),
    )(xt, w1t, w2t, w3t, w4t, b_all)

    # drop padded batch columns; back to the PyTorch (B, out_features) layout
    return out_t[:, :B].T


def init_params(key, input_features, h1, h2, h3, output_features):
    """Deterministic init mimicking nn.Linear's uniform(-1/sqrt(fan_in), 1/sqrt(fan_in))."""
    dims = [(input_features, h1), (h1, h2), (h2, h3), (h3, output_features)]
    params = {}
    for idx, (fan_in, fan_out) in enumerate(dims, start=1):
        key, kw, kb = jax.random.split(key, 3)
        bound = 1.0 / jnp.sqrt(jnp.float32(fan_in))
        params[f"w{idx}"] = jax.random.uniform(
            kw, (fan_in, fan_out), jnp.float32, minval=-bound, maxval=bound
        )
        params[f"b{idx}"] = jax.random.uniform(
            kb, (1, fan_out), jnp.float32, minval=-bound, maxval=bound
        )
    return params


def reference_forward(x, params):
    h = jnp.tanh(x @ params["w1"] + params["b1"])
    h = jnp.tanh(h @ params["w2"] + params["b2"])
    h = jnp.tanh(h @ params["w3"] + params["b3"])
    return jax.nn.sigmoid(h @ params["w4"] + params["b4"])


if __name__ == "__main__":
    # diabetes.csv has 8 feature columns -> input_features = 8
    BATCH = 8
    INPUT_FEATURES, H1, H2, H3, OUTPUT_FEATURES = 8, 32, 16, 8, 1

    key = jax.random.PRNGKey(0)
    key, kx = jax.random.split(key)
    x = jax.random.normal(kx, (BATCH, INPUT_FEATURES), jnp.float32)
    params = init_params(key, INPUT_FEATURES, H1, H2, H3, OUTPUT_FEATURES)

    fwd = jax.jit(neural_net_forward)

    out = jax.block_until_ready(fwd(x, params))
    ref = reference_forward(x, params)
    assert out.shape == (BATCH, OUTPUT_FEATURES)
    assert jnp.allclose(out, ref, atol=1e-5, rtol=1e-5), "mismatch vs JAX reference"

    # also exercise a batch that needs multiple (even-count) grid steps + padding
    key, kx2 = jax.random.split(key)
    x2 = jax.random.normal(kx2, (2100, INPUT_FEATURES), jnp.float32)
    out2 = jax.block_until_ready(fwd(x2, params))
    ref2 = reference_forward(x2, params)
    assert out2.shape == (2100, OUTPUT_FEATURES)
    assert jnp.allclose(out2, ref2, atol=1e-5, rtol=1e-5), "mismatch vs JAX reference (tiled)"

    print("KERNEL_OK")
</pallas_src>

<mosaic_0001>
module attributes {stable_mosaic.version = 11 : i64} {
  func.func @_mlp_kernel(%arg0: i32, %arg1: memref<8x128xf32, #tpu.memory_space<vmem>>, %arg2: memref<32x8xf32, #tpu.memory_space<vmem>>, %arg3: memref<16x32xf32, #tpu.memory_space<vmem>>, %arg4: memref<8x16xf32, #tpu.memory_space<vmem>>, %arg5: memref<1x8xf32, #tpu.memory_space<vmem>>, %arg6: memref<64x1xf32, #tpu.memory_space<vmem>>, %arg7: memref<1x128xf32, #tpu.memory_space<vmem>>) attributes {dimension_semantics = [#tpu.dimension_semantics<parallel>], iteration_bounds = array<i64: 1>, scalar_prefetch = 0 : i64, scratch_operands = 0 : i64, tpu.core_type = #tpu.core_type<tc>, window_params = [{transform_indices = @transform_0, window_bounds = array<i64: 8, 128>}, {pipeline_mode = #tpu.pipeline_mode<synchronous>, transform_indices = @transform_1, window_bounds = array<i64: 32, 8>}, {pipeline_mode = #tpu.pipeline_mode<synchronous>, transform_indices = @transform_2, window_bounds = array<i64: 16, 32>}, {pipeline_mode = #tpu.pipeline_mode<synchronous>, transform_indices = @transform_3, window_bounds = array<i64: 8, 16>}, {pipeline_mode = #tpu.pipeline_mode<synchronous>, transform_indices = @transform_4, window_bounds = array<i64: 1, 8>}, {pipeline_mode = #tpu.pipeline_mode<synchronous>, transform_indices = @transform_5, window_bounds = array<i64: 64, 1>}, {transform_indices = @transform_6, window_bounds = array<i64: 1, 128>}]} {
    %c0 = arith.constant 0 : index
    %c0_0 = arith.constant 0 : index
    %0 = vector.load %arg1[%c0, %c0_0] : memref<8x128xf32, #tpu.memory_space<vmem>>, vector<8x128xf32>
    %c0_1 = arith.constant 0 : index
    %c0_2 = arith.constant 0 : index
    %1 = vector.load %arg6[%c0_1, %c0_2] : memref<64x1xf32, #tpu.memory_space<vmem>>, vector<32x1xf32>
    %c32 = arith.constant 32 : index
    %c0_3 = arith.constant 0 : index
    %2 = vector.load %arg6[%c32, %c0_3] : memref<64x1xf32, #tpu.memory_space<vmem>>, vector<16x1xf32>
    %c48 = arith.constant 48 : index
    %c0_4 = arith.constant 0 : index
    %3 = vector.load %arg6[%c48, %c0_4] : memref<64x1xf32, #tpu.memory_space<vmem>>, vector<8x1xf32>
    %c56 = arith.constant 56 : index
    %c0_5 = arith.constant 0 : index
    %4 = vector.load %arg6[%c56, %c0_5] : memref<64x1xf32, #tpu.memory_space<vmem>>, vector<1x1xf32>
    %c0_6 = arith.constant 0 : index
    %c0_7 = arith.constant 0 : index
    %5 = vector.load %arg2[%c0_6, %c0_7] : memref<32x8xf32, #tpu.memory_space<vmem>>, vector<32x8xf32>
    %cst = arith.constant dense<0.000000e+00> : vector<32x128xf32>
    %6 = tpu.matmul %5, %0, %cst {dimension_numbers = #tpu.dot_dimension_numbers<[1], [0], [0], [1], [0, 0, 1, 1], [], []>} : vector<32x8xf32>, vector<8x128xf32>, vector<32x128xf32> -> vector<32x128xf32>
    %7 = vector.broadcast %1 : vector<32x1xf32> to vector<32x128xf32>
    %8 = arith.addf %6, %7 : vector<32x128xf32>
    %9 = math.tanh %8 : vector<32x128xf32>
    %c0_8 = arith.constant 0 : index
    %c0_9 = arith.constant 0 : index
    %10 = vector.load %arg3[%c0_8, %c0_9] : memref<16x32xf32, #tpu.memory_space<vmem>>, vector<16x32xf32>
    %cst_10 = arith.constant dense<0.000000e+00> : vector<16x128xf32>
    %11 = tpu.matmul %10, %9, %cst_10 {dimension_numbers = #tpu.dot_dimension_numbers<[1], [0], [0], [1], [0, 0, 1, 1], [], []>} : vector<16x32xf32>, vector<32x128xf32>, vector<16x128xf32> -> vector<16x128xf32>
    %12 = vector.broadcast %2 : vector<16x1xf32> to vector<16x128xf32>
    %13 = arith.addf %11, %12 : vector<16x128xf32>
    %14 = math.tanh %13 : vector<16x128xf32>
    %c0_11 = arith.constant 0 : index
    %c0_12 = arith.constant 0 : index
    %15 = vector.load %arg4[%c0_11, %c0_12] : memref<8x16xf32, #tpu.memory_space<vmem>>, vector<8x16xf32>
    %cst_13 = arith.constant dense<0.000000e+00> : vector<8x128xf32>
    %16 = tpu.matmul %15, %14, %cst_13 {dimension_numbers = #tpu.dot_dimension_numbers<[1], [0], [0], [1], [0, 0, 1, 1], [], []>} : vector<8x16xf32>, vector<16x128xf32>, vector<8x128xf32> -> vector<8x128xf32>
    %17 = vector.broadcast %3 : vector<8x1xf32> to vector<8x128xf32>
    %18 = arith.addf %16, %17 : vector<8x128xf32>
    %19 = math.tanh %18 : vector<8x128xf32>
    %c0_14 = arith.constant 0 : index
    %c0_15 = arith.constant 0 : index
    %20 = vector.load %arg5[%c0_14, %c0_15] : memref<1x8xf32, #tpu.memory_space<vmem>>, vector<1x8xf32>
    %cst_16 = arith.constant dense<0.000000e+00> : vector<1x128xf32>
    %21 = tpu.matmul %20, %19, %cst_16 {dimension_numbers = #tpu.dot_dimension_numbers<[1], [0], [0], [1], [0, 0, 1, 1], [], []>} : vector<1x8xf32>, vector<8x128xf32>, vector<1x128xf32> -> vector<1x128xf32>
    %22 = vector.broadcast %4 : vector<1x1xf32> to vector<1x128xf32>
    %23 = arith.addf %21, %22 : vector<1x128xf32>
    %24 = arith.negf %23 : vector<1x128xf32>
    %25 = math.exp %24 : vector<1x128xf32>
    %cst_17 = arith.constant 1.000000e+00 : f32
    %26 = vector.broadcast %cst_17 : f32 to vector<1x128xf32>
    %27 = arith.addf %26, %25 : vector<1x128xf32>
    %28 = arith.divf %26, %27 : vector<1x128xf32>
    %c0_18 = arith.constant 0 : index
    %c0_19 = arith.constant 0 : index
    %29 = vector.load %arg7[%c0_18, %c0_19] : memref<1x128xf32, #tpu.memory_space<vmem>>, vector<1x128xf32>
    tpu.vector_store %arg7[%c0_18, %c0_19], %28 {strides = array<i32>} : memref<1x128xf32, #tpu.memory_space<vmem>>, vector<1x128xf32>,
    return
  }
  func.func @transform_0(%arg0: i32) -> (i32, i32) {
    %c0_i32 = arith.constant 0 : i32
    %c0_i32_0 = arith.constant 0 : i32
    return %c0_i32, %arg0 : i32, i32
  }
  func.func @transform_1(%arg0: i32) -> (i32, i32) {
    %c0_i32 = arith.constant 0 : i32
    %c0_i32_0 = arith.constant 0 : i32
    %c0_i32_1 = arith.constant 0 : i32
    return %c0_i32, %c0_i32_0 : i32, i32
  }
  func.func @transform_2(%arg0: i32) -> (i32, i32) {
    %c0_i32 = arith.constant 0 : i32
    %c0_i32_0 = arith.constant 0 : i32
    %c0_i32_1 = arith.constant 0 : i32
    return %c0_i32, %c0_i32_0 : i32, i32
  }
  func.func @transform_3(%arg0: i32) -> (i32, i32) {
    %c0_i32 = arith.constant 0 : i32
    %c0_i32_0 = arith.constant 0 : i32
    %c0_i32_1 = arith.constant 0 : i32
    return %c0_i32, %c0_i32_0 : i32, i32
  }
  func.func @transform_4(%arg0: i32) -> (i32, i32) {
    %c0_i32 = arith.constant 0 : i32
    %c0_i32_0 = arith.constant 0 : i32
    %c0_i32_1 = arith.constant 0 : i32
    return %c0_i32, %c0_i32_0 : i32, i32
  }
  func.func @transform_5(%arg0: i32) -> (i32, i32) {
    %c0_i32 = arith.constant 0 : i32
    %c0_i32_0 = arith.constant 0 : i32
    %c0_i32_1 = arith.constant 0 : i32
    return %c0_i32, %c0_i32_0 : i32, i32
  }
  func.func @transform_6(%arg0: i32) -> (i32, i32) {
    %c0_i32 = arith.constant 0 : i32
    %c0_i32_0 = arith.constant 0 : i32
    return %c0_i32, %arg0 : i32, i32
  }
}

</mosaic_0001>

<llo_original>
// kernel: neural_net_forward.1
$region0: #{neural_net_forward.1}
  #allocation0 [shape = 'u32[]', space=smem, size = 0x4, offset = 0x4, fixed_abs, tag = 'smem constant byte address 0x4 - core index']
  #allocation1 [shape = 'u32[144,128]{1,0:T(1,128)}', space=vmem, size = 0x12000, scoped, tag = 'internal scratch']
  %s0 = inlined_call_operand.vmem [shape: f32[8,128], index: 0, kind: input, shape index: {}]
  %s1 = inlined_call_operand.vmem [shape: f32[32,8], index: 1, kind: input, shape index: {}]
  %s2 = inlined_call_operand.vmem [shape: f32[16,32], index: 2, kind: input, shape index: {}]
  %s3 = inlined_call_operand.vmem [shape: f32[8,16], index: 3, kind: input, shape index: {}]
  %s4 = inlined_call_operand.vmem [shape: f32[1,8], index: 4, kind: input, shape index: {}]
  %s5 = inlined_call_operand.vmem [shape: f32[64,1], index: 5, kind: input, shape index: {}]
  %s6 = inlined_call_operand.vmem [shape: f32[1,128], index: 6, kind: output, shape index: {}]
  %s7 = sld [smem:[#allocation0]]
  $region34: #{neural_net_forward.1} parent=0
    _
  %s9 = ssub.s32 1, %s7
  %s10 = scalar_select 0, %s9, %s7
  // Predicated region
  $region2: #{neural_net_forward.1} parent=0 // pred_check
    _
  $region3: #{neural_net_forward.1} parent=0 // pred_check_branch
    %12 = sbr.rel (0) target = $region5
  $region4: #{neural_net_forward.1} parent=0 // pred_region
    _
  $region5: #{neural_net_forward.1} parent=0 // pred_fallthru
    _
  // Predicated region
  $region6: #{neural_net_forward.1} parent=0 // pred_check
    _
  $region7: #{neural_net_forward.1} parent=0 // pred_check_branch
    %14 = sbr.rel (0) target = $region9
  $region8: #{neural_net_forward.1} parent=0 // pred_region
    _
  $region9: #{neural_net_forward.1} parent=0 // pred_fallthru
    _
  // Predicated region
  $region10: #{neural_net_forward.1} parent=0 // pred_check
    _
  $region11: #{neural_net_forward.1} parent=0 // pred_check_branch
    %16 = sbr.rel (0) target = $region13
  $region12: #{neural_net_forward.1} parent=0 // pred_region
    _
  $region13: #{neural_net_forward.1} parent=0 // pred_fallthru
    _
  // Predicated region
  $region14: #{neural_net_forward.1} parent=0 // pred_check
    _
  $region15: #{neural_net_forward.1} parent=0 // pred_check_branch
    %18 = sbr.rel (0) target = $region17
  $region16: #{neural_net_forward.1} parent=0 // pred_region
    _
  $region17: #{neural_net_forward.1} parent=0 // pred_fallthru
    _
  // Predicated region
  $region18: #{neural_net_forward.1} parent=0 // pred_check
    _
  $region19: #{neural_net_forward.1} parent=0 // pred_check_branch
    %20 = sbr.rel (0) target = $region21
  $region20: #{neural_net_forward.1} parent=0 // pred_region
    _
  $region21: #{neural_net_forward.1} parent=0 // pred_fallthru
    _
  // Predicated region
  $region22: #{neural_net_forward.1} parent=0 // pred_check
    _
  $region23: #{neural_net_forward.1} parent=0 // pred_check_branch
    %22 = sbr.rel (0) target = $region25
  $region24: #{neural_net_forward.1} parent=0 // pred_region
    _
  $region25: #{neural_net_forward.1} parent=0 // pred_fallthru
    _
  %v23 = vld [vmem:[%s0] sm:$0xff]
  %v24 = vld [vmem:[%s5] sm:$0xff]
  %v25 = vld [vmem:[%s5 + $0x8] sm:$0xff]
  %v26 = vld [vmem:[%s5 + $0x10] sm:$0xff]
  %v27 = vld [vmem:[%s5 + $0x18] sm:$0xff]
  %v28 = vld [vmem:[%s5 + $0x20] sm:$0xff]
  %v29 = vld [vmem:[%s5 + $0x28] sm:$0xff]
  %v30 = vld [vmem:[%s5 + $0x30] sm:$0xff]
  %v31 = vld [vmem:[%s5 + $0x38] sm:$0x1]
  %v32 = vld [vmem:[%s1] sm:$0xff]
  %v33 = vld [vmem:[%s1 + $0x8] sm:$0xff]
  %v34 = vld [vmem:[%s1 + $0x10] sm:$0xff]
  %v35 = vld [vmem:[%s1 + $0x18] sm:$0xff]
  %37 = vset.pattern.permute.xlu0 0
  %38 = vperm.xlu0 %37, %v24
  %v39 = vpop.permute.xlu0 %38
  %42 = vset.pattern.permute.xlu0 0
  %43 = vperm.xlu0 %42, %v25
  %v44 = vpop.permute.xlu0 %43
  %47 = vset.pattern.permute.xlu0 0
  %48 = vperm.xlu0 %47, %v26
  %v49 = vpop.permute.xlu0 %48
  %52 = vset.pattern.permute.xlu0 0
  %53 = vperm.xlu0 %52, %v27
  %v54 = vpop.permute.xlu0 %53
  %vm56 = vcmask 64512
  %v58 = vsel %vm56, %v32, 0
  %v61 = vsel %vm56, %v33, 0
  %v64 = vsel %vm56, %v34, 0
  %v67 = vsel %vm56, %v35, 0
  %69 = vmatprep.subr.mxu0 0.0
  %70 = vmatpush1.msra.mxu0 %v23
  %71 = vmatprep.subr.mxu0 0.0
  %72 = vmatpush1.msra.mxu0 0.0
  %73 = vmatprep.subr.mxu0 0.0
  %74 = vmatpush1.msra.mxu0 0.0
  %75 = vmatprep.subr.mxu0 0.0
  %76 = vmatpush1.msra.mxu0 0.0
  %77 = vmatprep.subr.mxu0 0.0
  %78 = vmatpush1.msra.mxu0 0.0
  %79 = vmatprep.subr.mxu0 0.0
  %80 = vmatpush1.msra.mxu0 0.0
  %81 = vmatprep.subr.mxu0 0.0
  %82 = vmatpush1.msra.mxu0 0.0
  %83 = vmatprep.subr.mxu0 0.0
  %84 = vmatpush1.msra.mxu0 0.0
  %85 = vmatprep.subr.mxu0 0.0
  %86 = vmatpush1.msra.mxu0 0.0
  %87 = vmatprep.subr.mxu0 0.0
  %88 = vmatpush1.msra.mxu0 0.0
  %89 = vmatprep.subr.mxu0 0.0
  %90 = vmatpush1.msra.mxu0 0.0
  %91 = vmatprep.subr.mxu0 0.0
  %92 = vmatpush1.msra.mxu0 0.0
  %93 = vmatprep.subr.mxu0 0.0
  %94 = vmatpush1.msra.mxu0 0.0
  %95 = vmatprep.subr.mxu0 0.0
  %96 = vmatpush1.msra.mxu0 0.0
  %97 = vmatprep.subr.mxu0 0.0
  %98 = vmatpush1.msra.mxu0 0.0
  %99 = vmatprep.subr.mxu0 0.0
  %100 = vmatpush1.msra.mxu0 0.0
  %101 = vmatprep.subr.mxu0 0.0
  %102 = vmatpush1.msra.mxu0 0.0
  %103 = vmatprep.subr.mxu0 0.0
  %104 = vmatpush1.msra.mxu0 0.0
  %105 = vmatprep.subr.mxu0 0.0
  %106 = vmatpush1.msra.mxu0 0.0
  %107 = vmatprep.subr.mxu0 0.0
  %108 = vmatpush1.msra.mxu0 0.0
  %109 = vmatprep.subr.mxu0 0.0
  %110 = vmatpush1.msra.mxu0 0.0
  %111 = vmatprep.subr.mxu0 0.0
  %112 = vmatpush1.msra.mxu0 0.0
  %113 = vmatprep.subr.mxu0 0.0
  %114 = vmatpush1.msra.mxu0 0.0
  %115 = vmatprep.subr.mxu0 0.0
  %116 = vmatpush1.msra.mxu0 0.0
  %117 = vmatprep.subr.mxu0 0.0
  %118 = vmatpush1.msra.mxu0 0.0
  %119 = vmatprep.subr.mxu0 0.0
  %120 = vmatpush1.msra.mxu0 0.0
  %121 = vmatprep.subr.mxu0 0.0
  %122 = vmatpush1.msra.mxu0 0.0
  %123 = vmatprep.subr.mxu0 0.0
  %124 = vmatpush1.msra.mxu0 0.0
  %125 = vmatprep.subr.mxu0 0.0
  %126 = vmatpush1.msra.mxu0 0.0
  %127 = vmatprep.subr.mxu0 0.0
  %128 = vmatpush1.msra.mxu0 0.0
  %129 = vmatprep.subr.mxu0 0.0
  %130 = vmatpush1.msra.mxu0 0.0
  %131 = vmatprep.subr.mxu0 0.0
  %132 = vmatpush1.msra.mxu0 0.0
  %133 = vmatprep.mubr.f32.mxu0 0.0
  %134 = vmatmul.mubr.f32.gmra.mrb[0].mxu0 %v58
  %v135 = vpop.f32.mrb[0].mxu0
  %v136 = vadd.f32 %v39, %v135
  %v137 = vpop.f32.mrb[0].mxu0
  %138 = vmatprep.mubr.f32.mxu0 0.0
  %139 = vmatmul.mubr.f32.gmra.mrb[0].mxu0 %v61
  %v140 = vpop.f32.mrb[0].mxu0
  %v141 = vadd.f32 %v44, %v140
  %v142 = vpop.f32.mrb[0].mxu0
  %143 = vmatprep.mubr.f32.mxu0 0.0
  %144 = vmatmul.mubr.f32.gmra.mrb[0].mxu0 %v64
  %v145 = vpop.f32.mrb[0].mxu0
  %v146 = vadd.f32 %v49, %v145
  %v147 = vpop.f32.mrb[0].mxu0
  %148 = vmatprep.mubr.f32.mxu0 0.0
  %149 = vmatmul.mubr.f32.gmra.mrb[0].mxu0 %v67
  %v150 = vpop.f32.mrb[0].mxu0
  %v151 = vadd.f32 %v54, %v150
  %v152 = vpop.f32.mrb[0].mxu0
  %153 = vdwg.mxu0
  %v154 = vtanh.pop %v136
  %v155 = vtanh.pop %v141
  %v156 = vtanh.pop %v146
  %v157 = vtanh.pop %v151
  %v158 = vld [vmem:[%s2] sm:$0xff]
  %v159 = vld [vmem:[%s2 + $0x8] sm:$0xff]
  %161 = vset.pattern.permute.xlu0 0
  %162 = vperm.xlu0 %161, %v28
  %v163 = vpop.permute.xlu0 %162
  %166 = vset.pattern.permute.xlu0 0
  %167 = vperm.xlu0 %166, %v29
  %v168 = vpop.permute.xlu0 %167
  %vm170 = vcmask 261120
  %v172 = vsel %vm170, %v158, 0
  %v175 = vsel %vm170, %v159, 0
  %177 = vmatprep.subr.mxu0 0.0
  %178 = vmatpush1.msra.mxu0 %v154
  %179 = vmatprep.subr.mxu0 0.0
  %180 = vmatpush1.msra.mxu0 %v155
  %181 = vmatprep.subr.mxu0 0.0
  %182 = vmatpush1.msra.mxu0 %v156
  %183 = vmatprep.subr.mxu0 0.0
  %184 = vmatpush1.msra.mxu0 %v157
  %185 = vmatprep.subr.mxu0 0.0
  %186 = vmatpush1.msra.mxu0 0.0
  %187 = vmatprep.subr.mxu0 0.0
  %188 = vmatpush1.msra.mxu0 0.0
  %189 = vmatprep.subr.mxu0 0.0
  %190 = vmatpush1.msra.mxu0 0.0
  %191 = vmatprep.subr.mxu0 0.0
  %192 = vmatpush1.msra.mxu0 0.0
  %193 = vmatprep.subr.mxu0 0.0
  %194 = vmatpush1.msra.mxu0 0.0
  %195 = vmatprep.subr.mxu0 0.0
  %196 = vmatpush1.msra.mxu0 0.0
  %197 = vmatprep.subr.mxu0 0.0
  %198 = vmatpush1.msra.mxu0 0.0
  %199 = vmatprep.subr.mxu0 0.0
  %200 = vmatpush1.msra.mxu0 0.0
  %201 = vmatprep.subr.mxu0 0.0
  %202 = vmatpush1.msra.mxu0 0.0
  %203 = vmatprep.subr.mxu0 0.0
  %204 = vmatpush1.msra.mxu0 0.0
  %205 = vmatprep.subr.mxu0 0.0
  %206 = vmatpush1.msra.mxu0 0.0
  %207 = vmatprep.subr.mxu0 0.0
  %208 = vmatpush1.msra.mxu0 0.0
  %209 = vmatprep.subr.mxu0 0.0
  %210 = vmatpush1.msra.mxu0 0.0
  %211 = vmatprep.subr.mxu0 0.0
  %212 = vmatpush1.msra.mxu0 0.0
  %213 = vmatprep.subr.mxu0 0.0
  %214 = vmatpush1.msra.mxu0 0.0
  %215 = vmatprep.subr.mxu0 0.0
  %216 = vmatpush1.msra.mxu0 0.0
  %217 = vmatprep.subr.mxu0 0.0
  %218 = vmatpush1.msra.mxu0 0.0
  %219 = vmatprep.subr.mxu0 0.0
  %220 = vmatpush1.msra.mxu0 0.0
  %221 = vmatprep.subr.mxu0 0.0
  %222 = vmatpush1.msra.mxu0 0.0
  %223 = vmatprep.subr.mxu0 0.0
  %224 = vmatpush1.msra.mxu0 0.0
  %225 = vmatprep.subr.mxu0 0.0
  %226 = vmatpush1.msra.mxu0 0.0
  %227 = vmatprep.subr.mxu0 0.0
  %228 = vmatpush1.msra.mxu0 0.0
  %229 = vmatprep.subr.mxu0 0.0
  %230 = vmatpush1.msra.mxu0 0.0
  %231 = vmatprep.subr.mxu0 0.0
  %232 = vmatpush1.msra.mxu0 0.0
  %233 = vmatprep.subr.mxu0 0.0
  %234 = vmatpush1.msra.mxu0 0.0
  %235 = vmatprep.subr.mxu0 0.0
  %236 = vmatpush1.msra.mxu0 0.0
  %237 = vmatprep.subr.mxu0 0.0
  %238 = vmatpush1.msra.mxu0 0.0
  %239 = vmatprep.subr.mxu0 0.0
  %240 = vmatpush1.msra.mxu0 0.0
  %241 = vmatprep.mubr.f32.mxu0 0.0
  %242 = vmatmul.mubr.f32.gmra.mrb[0].mxu0 %v172
  %v243 = vpop.f32.mrb[0].mxu0
  %v244 = vadd.f32 %v163, %v243
  %v245 = vpop.f32.mrb[0].mxu0
  %246 = vmatprep.mubr.f32.mxu0 0.0
  %247 = vmatmul.mubr.f32.gmra.mrb[0].mxu0 %v175
  %v248 = vpop.f32.mrb[0].mxu0
  %v249 = vadd.f32 %v168, %v248
  %v250 = vpop.f32.mrb[0].mxu0
  %251 = vdwg.mxu0
  %v252 = vtanh.pop %v244
  %v253 = vtanh.pop %v249
  %v254 = vld [vmem:[%s3] sm:$0xff]
  %256 = vset.pattern.permute.xlu0 0
  %257 = vperm.xlu0 %256, %v30
  %v258 = vpop.permute.xlu0 %257
  %vm260 = vcmask 130048
  %v262 = vsel %vm260, %v254, 0
  %264 = vmatprep.subr.mxu0 0.0
  %265 = vmatpush1.msra.mxu0 %v252
  %266 = vmatprep.subr.mxu0 0.0
  %267 = vmatpush1.msra.mxu0 %v253
  %268 = vmatprep.subr.mxu0 0.0
  %269 = vmatpush1.msra.mxu0 0.0
  %270 = vmatprep.subr.mxu0 0.0
  %271 = vmatpush1.msra.mxu0 0.0
  %272 = vmatprep.subr.mxu0 0.0
  %273 = vmatpush1.msra.mxu0 0.0
  %274 = vmatprep.subr.mxu0 0.0
  %275 = vmatpush1.msra.mxu0 0.0
  %276 = vmatprep.subr.mxu0 0.0
  %277 = vmatpush1.msra.mxu0 0.0
  %278 = vmatprep.subr.mxu0 0.0
  %279 = vmatpush1.msra.mxu0 0.0
  %280 = vmatprep.subr.mxu0 0.0
  %281 = vmatpush1.msra.mxu0 0.0
  %282 = vmatprep.subr.mxu0 0.0
  %283 = vmatpush1.msra.mxu0 0.0
  %284 = vmatprep.subr.mxu0 0.0
  %285 = vmatpush1.msra.mxu0 0.0
  %286 = vmatprep.subr.mxu0 0.0
  %287 = vmatpush1.msra.mxu0 0.0
  %288 = vmatprep.subr.mxu0 0.0
  %289 = vmatpush1.msra.mxu0 0.0
  %290 = vmatprep.subr.mxu0 0.0
  %291 = vmatpush1.msra.mxu0 0.0
  %292 = vmatprep.subr.mxu0 0.0
  %293 = vmatpush1.msra.mxu0 0.0
  %294 = vmatprep.subr.mxu0 0.0
  %295 = vmatpush1.msra.mxu0 0.0
  %296 = vmatprep.subr.mxu0 0.0
  %297 = vmatpush1.msra.mxu0 0.0
  %298 = vmatprep.subr.mxu0 0.0
  %299 = vmatpush1.msra.mxu0 0.0
  %300 = vmatprep.subr.mxu0 0.0
  %301 = vmatpush1.msra.mxu0 0.0
  %302 = vmatprep.subr.mxu0 0.0
  %303 = vmatpush1.msra.mxu0 0.0
  %304 = vmatprep.subr.mxu0 0.0
  %305 = vmatpush1.msra.mxu0 0.0
  %306 = vmatprep.subr.mxu0 0.0
  %307 = vmatpush1.msra.mxu0 0.0
  %308 = vmatprep.subr.mxu0 0.0
  %309 = vmatpush1.msra.mxu0 0.0
  %310 = vmatprep.subr.mxu0 0.0
  %311 = vmatpush1.msra.mxu0 0.0
  %312 = vmatprep.subr.mxu0 0.0
  %313 = vmatpush1.msra.mxu0 0.0
  %314 = vmatprep.subr.mxu0 0.0
  %315 = vmatpush1.msra.mxu0 0.0
  %316 = vmatprep.subr.mxu0 0.0
  %317 = vmatpush1.msra.mxu0 0.0
  %318 = vmatprep.subr.mxu0 0.0
  %319 = vmatpush1.msra.mxu0 0.0
  %320 = vmatprep.subr.mxu0 0.0
  %321 = vmatpush1.msra.mxu0 0.0
  %322 = vmatprep.subr.mxu0 0.0
  %323 = vmatpush1.msra.mxu0 0.0
  %324 = vmatprep.subr.mxu0 0.0
  %325 = vmatpush1.msra.mxu0 0.0
  %326 = vmatprep.subr.mxu0 0.0
  %327 = vmatpush1.msra.mxu0 0.0
  %328 = vmatprep.mubr.f32.mxu0 0.0
  %329 = vmatmul.mubr.f32.gmra.mrb[0].mxu0 %v262
  %v330 = vpop.f32.mrb[0].mxu0
  %v331 = vadd.f32 %v258, %v330
  %v332 = vpop.f32.mrb[0].mxu0
  %333 = vdwg.mxu0
  %v334 = vtanh.pop %v331
  %v335 = vld [vmem:[%s4] sm:$0x1]
  %337 = vset.pattern.permute.xlu0 0
  %338 = vperm.xlu0 %337, %v31
  %v339 = vpop.permute.xlu0 %338
  %v342 = vsel %vm56, %v335, 0
  %344 = vmatprep.subr.mxu0 0.0
  %345 = vmatpush1.msra.mxu0 %v334
  %346 = vmatprep.subr.mxu0 0.0
  %347 = vmatpush1.msra.mxu0 0.0
  %348 = vmatprep.subr.mxu0 0.0
  %349 = vmatpush1.msra.mxu0 0.0
  %350 = vmatprep.subr.mxu0 0.0
  %351 = vmatpush1.msra.mxu0 0.0
  %352 = vmatprep.subr.mxu0 0.0
  %353 = vmatpush1.msra.mxu0 0.0
  %354 = vmatprep.subr.mxu0 0.0
  %355 = vmatpush1.msra.mxu0 0.0
  %356 = vmatprep.subr.mxu0 0.0
  %357 = vmatpush1.msra.mxu0 0.0
  %358 = vmatprep.subr.mxu0 0.0
  %359 = vmatpush1.msra.mxu0 0.0
  %360 = vmatprep.subr.mxu0 0.0
  %361 = vmatpush1.msra.mxu0 0.0
  %362 = vmatprep.subr.mxu0 0.0
  %363 = vmatpush1.msra.mxu0 0.0
  %364 = vmatprep.subr.mxu0 0.0
  %365 = vmatpush1.msra.mxu0 0.0
  %366 = vmatprep.subr.mxu0 0.0
  %367 = vmatpush1.msra.mxu0 0.0
  %368 = vmatprep.subr.mxu0 0.0
  %369 = vmatpush1.msra.mxu0 0.0
  %370 = vmatprep.subr.mxu0 0.0
  %371 = vmatpush1.msra.mxu0 0.0
  %372 = vmatprep.subr.mxu0 0.0
  %373 = vmatpush1.msra.mxu0 0.0
  %374 = vmatprep.subr.mxu0 0.0
  %375 = vmatpush1.msra.mxu0 0.0
  %376 = vmatprep.subr.mxu0 0.0
  %377 = vmatpush1.msra.mxu0 0.0
  %378 = vmatprep.subr.mxu0 0.0
  %379 = vmatpush1.msra.mxu0 0.0
  %380 = vmatprep.subr.mxu0 0.0
  %381 = vmatpush1.msra.mxu0 0.0
  %382 = vmatprep.subr.mxu0 0.0
  %383 = vmatpush1.msra.mxu0 0.0
  %384 = vmatprep.subr.mxu0 0.0
  %385 = vmatpush1.msra.mxu0 0.0
  %386 = vmatprep.subr.mxu0 0.0
  %387 = vmatpush1.msra.mxu0 0.0
  %388 = vmatprep.subr.mxu0 0.0
  %389 = vmatpush1.msra.mxu0 0.0
  %390 = vmatprep.subr.mxu0 0.0
  %391 = vmatpush1.msra.mxu0 0.0
  %392 = vmatprep.subr.mxu0 0.0
  %393 = vmatpush1.msra.mxu0 0.0
  %394 = vmatprep.subr.mxu0 0.0
  %395 = vmatpush1.msra.mxu0 0.0
  %396 = vmatprep.subr.mxu0 0.0
  %397 = vmatpush1.msra.mxu0 0.0
  %398 = vmatprep.subr.mxu0 0.0
  %399 = vmatpush1.msra.mxu0 0.0
  %400 = vmatprep.subr.mxu0 0.0
  %401 = vmatpush1.msra.mxu0 0.0
  %402 = vmatprep.subr.mxu0 0.0
  %403 = vmatpush1.msra.mxu0 0.0
  %404 = vmatprep.subr.mxu0 0.0
  %405 = vmatpush1.msra.mxu0 0.0
  %406 = vmatprep.subr.mxu0 0.0
  %407 = vmatpush1.msra.mxu0 0.0
  %408 = vmatprep.mubr.f32.mxu0 0.0
  %409 = vmatmul.mubr.f32.gmra.mrb[0].mxu0 %v342
  %v410 = vpop.f32.mrb[0].mxu0
  %v411 = vadd.f32 %v339, %v410
  %v412 = vpop.f32.mrb[0].mxu0
  %413 = vdwg.mxu0
  %v414 = vxor.u32 %v411, 2147483648
  %v415 = vmul.f32 %v414, 1.442695
  %v416 = vpow.pop %v415
  %v417 = vadd.f32 %v416, 1.0
  %v418 = vrcp.pop %v417
  %v419 = vmul.f32 1.0, %v418
  %420 = vst [vmem:[%s6] sm:$0x1] %v419
  // Predicated region
  $region26: #{neural_net_forward.1} parent=0 // pred_check
    _
  $region27: #{neural_net_forward.1} parent=0 // pred_check_branch
    %422 = sbr.rel (0) target = $region29
  $region28: #{neural_net_forward.1} parent=0 // pred_region
    _
  $region29: #{neural_net_forward.1} parent=0 // pred_fallthru
    _
  // Predicated region
  $region30: #{neural_net_forward.1} parent=0 // pred_check
    _
  $region31: #{neural_net_forward.1} parent=0 // pred_check_branch
    %424 = sbr.rel (0) target = $region33
  $region32: #{neural_net_forward.1} parent=0 // pred_region
    _
  $region33: #{neural_net_forward.1} parent=0 // pred_fallthru
    _

</llo_original>
